<compile_context>
chip_gen: v7x
topology: tpu7x:2x2x1
jax: 0.10.0
libtpu: 0.0.40
codegen_flags: <defaults>
</compile_context>

<pallas_src>
import functools

import jax
import jax.numpy as jnp
import numpy as np
from jax.experimental import pallas as pl
from jax.experimental.pallas import tpu as pltpu


# ----------------------------------------------------------------------------
# Pallas kernel: (optionally multi-input / channel-concat) Conv1d(k, s=1, p=k//2)
#                + folded BN affine + optional ReLU, one (head, batch) tile/step.
# ----------------------------------------------------------------------------
def _make_conv_kernel(n_inputs, ci_list, K, T, Co, apply_relu):
    ci_list = tuple(int(c) for c in ci_list)
    Ci_total = sum(ci_list)
    pad = (K - 1) // 2

    def kernel(*refs):
        # refs = x_refs[n_inputs] (1,1,T,Ci_n) bf16, w_ref (1,K,Ci_total,Co) bf16,
        #        scale_ref (1,1,Co) f32, shift_ref (1,1,Co) f32,
        #        o_ref (1,1,T,Co) bf16, [pad_scratch (T+K-1, Ci_total) bf16]
        x_refs = refs[:n_inputs]
        w_ref, scale_ref, shift_ref, o_ref = refs[n_inputs:n_inputs + 4]

        acc = jnp.zeros((T, Co), jnp.float32)
        if K == 1:
            off = 0
            for n in range(n_inputs):
                ci = ci_list[n]
                acc = acc + jnp.dot(
                    x_refs[n][0, 0],
                    w_ref[0, 0, off:off + ci, :],
                    preferred_element_type=jnp.float32,
                )
                off += ci
        else:
            pad_ref = refs[n_inputs + 4]
            # zero halo rows, copy inputs into their lane ranges (in-kernel pad
            # + channel-concat; no HBM traffic).
            zero_row = jnp.zeros((1, Ci_total), pad_ref.dtype)
            pad_ref[pl.ds(0, 1), :] = zero_row
            pad_ref[pl.ds(T + K - 2, 1), :] = zero_row
            off = 0
            for n in range(n_inputs):
                ci = ci_list[n]
                pad_ref[pl.ds(pad, T), off:off + ci] = x_refs[n][0, 0]
                off += ci
            # K shifted MXU matmuls, f32 accumulation.
            for tap in range(K):
                acc = acc + jnp.dot(
                    pad_ref[pl.ds(tap, T), :],
                    w_ref[0, tap],
                    preferred_element_type=jnp.float32,
                )

        y = acc * scale_ref[0] + shift_ref[0]          # f32 epilogue (v5e-safe)
        if apply_relu:
            y = jnp.maximum(y, 0.0)
        o_ref[0, 0] = y.astype(o_ref.dtype)

    return kernel


@functools.lru_cache(maxsize=None)
def _build_conv_call(head_exts, ci_list, G, B, T, Co, K, apply_relu):
    """head_exts[n]: 1 (shared across heads) or G (per-head) for input n."""
    n_inputs = len(ci_list)
    Ci_total = sum(ci_list)
    kernel = _make_conv_kernel(n_inputs, ci_list, K, T, Co, apply_relu)

    def make_in_spec(hext, ci):
        def imap(g, b, _h=hext):
            return (g if _h > 1 else 0, b, 0, 0)
        return pl.BlockSpec((1, 1, T, ci), imap)

    in_specs = [make_in_spec(h, c) for h, c in zip(head_exts, ci_list)]
    in_specs += [
        pl.BlockSpec((1, K, Ci_total, Co), lambda g, b: (g, 0, 0, 0)),
        pl.BlockSpec((1, 1, Co), lambda g, b: (g, 0, 0)),
        pl.BlockSpec((1, 1, Co), lambda g, b: (g, 0, 0)),
    ]
    scratch = []
    if K > 1:
        scratch = [pltpu.VMEM((T + K - 1, Ci_total), jnp.bfloat16)]

    return pl.pallas_call(
        kernel,
        out_shape=jax.ShapeDtypeStruct((G, B, T, Co), jnp.bfloat16),
        grid_spec=pltpu.PrefetchScalarGridSpec(
            num_scalar_prefetch=0,
            grid=(G, B),                      # batch innermost -> weight revisit
            in_specs=in_specs,
            out_specs=pl.BlockSpec((1, 1, T, Co), lambda g, b: (g, b, 0, 0)),
            scratch_shapes=scratch,
        ),
        compiler_params=pltpu.CompilerParams(
            dimension_semantics=("parallel", "parallel"),
        ),
    )


def conv_block(xs, p, apply_relu=True):
    """xs: list of (Gn, B, T, Ci_n) bf16 arrays (Gn in {1, G}).
    p: {'w': (G, K, sum Ci, Co) bf16, 'scale': (G,1,Co) f32, 'shift': (G,1,Co) f32}."""
    if not isinstance(xs, (list, tuple)):
        xs = [xs]
    G, K, Ci_total, Co = (int(d) for d in p["w"].shape)
    B, T = int(xs[0].shape[1]), int(xs[0].shape[2])
    head_exts = tuple(int(x.shape[0]) for x in xs)
    ci_list = tuple(int(x.shape[3]) for x in xs)
    assert sum(ci_list) == Ci_total
    call = _build_conv_call(head_exts, ci_list, G, B, T, Co, K, bool(apply_relu))
    return call(*xs, p["w"], p["scale"], p["shift"])


# ----------------------------------------------------------------------------
# Pure-JAX reference for one conv block (used only for in-script validation)
# ----------------------------------------------------------------------------
def conv_block_ref(xs, p, apply_relu=True):
    if not isinstance(xs, (list, tuple)):
        xs = [xs]
    G, K, Ci_total, Co = p["w"].shape
    xs = [jnp.broadcast_to(a, (G,) + a.shape[1:]) for a in xs]
    x = jnp.concatenate(xs, axis=-1).astype(jnp.float32)     # (G,B,T,Ci)
    T = x.shape[2]
    pad = (K - 1) // 2
    xp = jnp.pad(x, ((0, 0), (0, 0), (pad, pad), (0, 0)))
    acc = jnp.zeros(x.shape[:3] + (Co,), jnp.float32)
    for tap in range(K):
        acc = acc + jnp.einsum("gbtc,gcd->gbtd",
                               xp[:, :, tap:tap + T, :],
                               p["w"][:, tap].astype(jnp.float32))
    y = acc * p["scale"][:, None] + p["shift"][:, None]
    if apply_relu:
        y = jnp.maximum(y, 0.0)
    return y


# ----------------------------------------------------------------------------
# Glue ops on (G, B, T, C) channels-last activations (cheap; plain JAX)
# ----------------------------------------------------------------------------
def maxpool1d_2(x):                       # nn.MaxPool1d(2)
    G, B, T, C = x.shape
    return jnp.max(x.reshape(G, B, T // 2, 2, C), axis=3)


def upsample2(x):                         # nn.Upsample(scale_factor=2, nearest)
    return jnp.repeat(x, 2, axis=2)


def interpolate_nearest(x, out_t):        # F.interpolate(x, size=out_t), nearest
    T = x.shape[2]
    if T == out_t:
        return x
    idx = (jnp.arange(out_t) * T) // out_t
    return x[:, :, idx, :]


# ----------------------------------------------------------------------------
# Deterministic parameter init (folds conv bias + eval-mode BatchNorm)
# ----------------------------------------------------------------------------
def _init_cnr(key, ci, co, k=3):
    kw, kb, kg, kbe, km, kv = jax.random.split(key, 6)
    w = jax.random.normal(kw, (k, ci, co), jnp.float32) / np.sqrt(ci * k)
    bias = 0.01 * jax.random.normal(kb, (co,), jnp.float32)
    gamma = 1.0 + 0.1 * jax.random.normal(kg, (co,), jnp.float32)
    beta = 0.1 * jax.random.normal(kbe, (co,), jnp.float32)
    mean = 0.1 * jax.random.normal(km, (co,), jnp.float32)
    var = 1.0 + 0.1 * jnp.abs(jax.random.normal(kv, (co,), jnp.float32))
    eps = 1e-5
    scale = gamma / jnp.sqrt(var + eps)                  # BN scale
    shift = (bias - mean) * scale + beta                 # folded bias + BN shift
    return {"w": w.astype(jnp.bfloat16),
            "scale": scale.reshape(1, co),
            "shift": shift.reshape(1, co)}


def _init_conv1x1_padded(key, ci, co, co_pad):
    # final nn.Conv1d(ci, co, 1, 1); output channels zero-padded to co_pad for
    # lane-dense (128-wide) stores; wrapper slices back to `co`.
    kw, kb = jax.random.split(key, 2)
    w = jax.random.normal(kw, (1, ci, co), jnp.float32) / np.sqrt(ci)
    bias = 0.01 * jax.random.normal(kb, (co,), jnp.float32)
    w = jnp.pad(w, ((0, 0), (0, 0), (0, co_pad - co)))
    shift = jnp.pad(bias, (0, co_pad - co)).reshape(1, co_pad)
    return {"w": w.astype(jnp.bfloat16),
            "scale": jnp.ones((1, co_pad), jnp.float32),
            "shift": shift}


def _lift(p):      # add head axis of size 1 (encoder layers)
    return {k: v[None] for k, v in p.items()}


def init_encoder_decoder_params(key, each_dim, co_pad=128):
    ks = jax.random.split(key, 11)
    enc = {
        "down1_0": _lift(_init_cnr(ks[0], 64, 64)),
        "down1_1": _lift(_init_cnr(ks[1], 64, 128)),
        "down2_0": _lift(_init_cnr(ks[2], 128, 128)),
        "down2_1": _lift(_init_cnr(ks[3], 128, 256)),
        "down3_0": _lift(_init_cnr(ks[4], 256, 256)),
        "down3_1": _lift(_init_cnr(ks[5], 256, 512)),
        "down4_0": _lift(_init_cnr(ks[6], 512, 512)),
        "down4_1": _lift(_init_cnr(ks[7], 512, 1024)),
    }
    in_ch = 1024
    out_dims = (each_dim[0] + each_dim[3], each_dim[1], each_dim[2])  # face/body/hand
    heads = []
    for hk, od in zip((ks[8], ks[9], ks[10]), out_dims):
        hks = jax.random.split(hk, 7)
        heads.append({
            "up1_0": _init_cnr(hks[0], in_ch // 2 + in_ch, in_ch // 2),
            "up1_1": _init_cnr(hks[1], in_ch // 2, in_ch // 2),
            "up2_0": _init_cnr(hks[2], in_ch // 4 + in_ch // 2, in_ch // 4),
            "up2_1": _init_cnr(hks[3], in_ch // 4, in_ch // 4),
            "up3_0": _init_cnr(hks[4], in_ch // 8 + in_ch // 4, in_ch // 8),
            "up3_1": _init_cnr(hks[5], in_ch // 8, in_ch // 8),
            "up3_2": _init_conv1x1_padded(hks[6], in_ch // 8, od, co_pad),
        })
    # stack the three heads along a leading head axis (fused decoder)
    dec = {name: {k: jnp.stack([h[name][k] for h in heads], axis=0)
                  for k in heads[0][name]}
           for name in heads[0]}
    return {"enc": enc, "dec": dec}, out_dims


# ----------------------------------------------------------------------------
# Forward pass (mirrors EncoderDecoder.forward / Deocoder.forward)
# ----------------------------------------------------------------------------
@functools.partial(jax.jit, static_argnums=(2,))
def encoder_decoder_forward(params, spectrogram_nct, out_dims):
    enc, dec = params["enc"], params["dec"]
    # (B, 64, T) NCT -> (1, B, T, 64) channels-last, bf16, head axis = 1
    x = jnp.transpose(spectrogram_nct, (0, 2, 1))[None].astype(jnp.bfloat16)

    x1 = conv_block(conv_block(x, enc["down1_0"]), enc["down1_1"])    # (1,B,T,128)
    xp = maxpool1d_2(x1)
    x2 = conv_block(conv_block(xp, enc["down2_0"]), enc["down2_1"])   # (1,B,T/2,256)
    xp = maxpool1d_2(x2)
    x3 = conv_block(conv_block(xp, enc["down3_0"]), enc["down3_1"])   # (1,B,T/4,512)
    xp = maxpool1d_2(x3)
    xb = conv_block(conv_block(xp, enc["down4_0"]), enc["down4_1"])   # (1,B,T/8,1024)
    xb = upsample2(xb)                                                # (1,B,T/4,1024)

    # fused 3-head decoder (face/body/hand share x, x1, x2, x3)
    y = interpolate_nearest(xb, x3.shape[2])
    y = conv_block([y, x3], dec["up1_0"])                 # cat fused: 1024+512 -> 512
    y = conv_block(y, dec["up1_1"])
    y = upsample2(y)
    y = interpolate_nearest(y, x2.shape[2])
    y = conv_block([y, x2], dec["up2_0"])                 # 512+256 -> 256
    y = conv_block(y, dec["up2_1"])
    y = upsample2(y)
    y = interpolate_nearest(y, x1.shape[2])
    y = conv_block([y, x1], dec["up3_0"])                 # 256+128 -> 128
    y = conv_block(y, dec["up3_1"])
    y = conv_block(y, dec["up3_2"], apply_relu=False)     # 1x1 conv, Co padded to 128

    # slice the padded head outputs, back to PyTorch (B, C_out, T), f32
    outs = []
    for h, dim in enumerate(out_dims):
        o = y[h, :, :, :dim].astype(jnp.float32)          # (B, T, dim)
        outs.append(jnp.transpose(o, (0, 2, 1)))          # (B, dim, T)
    return tuple(outs)


# ----------------------------------------------------------------------------
if __name__ == "__main__":
    key = jax.random.PRNGKey(0)
    k_param, k_in, k_a, k_b = jax.random.split(key, 4)

    # Module hard-codes channel widths (64 -> ... -> 1024); keep B and T small.
    B, C_in, T = 2, 64, 32          # T divisible by 8 (three MaxPool1d(2) stages)
    each_dim = [6, 8, 10, 4]        # face/body/hand/exp dims -> outputs 10, 8, 10

    params, out_dims = init_encoder_decoder_params(k_param, each_dim)
    spectrogram = jax.random.normal(k_in, (B, C_in, T), jnp.float32)

    # --- light correctness checks of the Pallas conv kernel vs pure-JAX ref ---
    enc, dec = params["enc"], params["dec"]
    x_chk = jax.random.normal(k_a, (1, B, T, 64), jnp.float32).astype(jnp.bfloat16)
    got = conv_block(x_chk, enc["down1_0"])
    ref = conv_block_ref(x_chk, enc["down1_0"])
    np.testing.assert_allclose(np.asarray(got, np.float32), np.asarray(ref),
                               rtol=0.06, atol=0.06)
    # concat-fused, multi-head path (two inputs shared across 3 heads)
    y_chk = jax.random.normal(k_b, (1, B, T // 4, 1024), jnp.float32).astype(jnp.bfloat16)
    s_chk = jax.random.normal(k_b, (1, B, T // 4, 512), jnp.float32).astype(jnp.bfloat16)
    got2 = conv_block([y_chk, s_chk], dec["up1_0"])
    ref2 = conv_block_ref([y_chk, s_chk], dec["up1_0"])
    np.testing.assert_allclose(np.asarray(got2, np.float32), np.asarray(ref2),
                               rtol=0.06, atol=0.06)

    # --- full forward pass ---
    face, body, hand = encoder_decoder_forward(params, spectrogram, out_dims)
    jax.block_until_ready((face, body, hand))

    assert face.shape == (B, each_dim[0] + each_dim[3], T)
    assert body.shape == (B, each_dim[1], T)
    assert hand.shape == (B, each_dim[2], T)
    assert bool(jnp.all(jnp.isfinite(face)))
    assert bool(jnp.all(jnp.isfinite(body)))
    assert bool(jnp.all(jnp.isfinite(hand)))

    print("KERNEL_OK")
</pallas_src>

<mosaic_0001>
module attributes {stable_mosaic.version = 11 : i64} {
  func.func @kernel(%arg0: i32, %arg1: i32, %arg2: memref<1x1x32x64xbf16, #tpu.memory_space<vmem>>, %arg3: memref<1x3x64x64xbf16, #tpu.memory_space<vmem>>, %arg4: memref<1x1x64xf32, #tpu.memory_space<vmem>>, %arg5: memref<1x1x64xf32, #tpu.memory_space<vmem>>, %arg6: memref<1x1x32x64xbf16, #tpu.memory_space<vmem>>, %arg7: memref<34x64xbf16, #tpu.memory_space<vmem>>) attributes {dimension_semantics = [#tpu.dimension_semantics<parallel>, #tpu.dimension_semantics<parallel>], iteration_bounds = array<i64: 1, 2>, scalar_prefetch = 0 : i64, scratch_operands = 1 : i64, tpu.core_type = #tpu.core_type<tc>, window_params = [{transform_indices = @transform_0, window_bounds = array<i64: 1, 1, 32, 64>}, {transform_indices = @transform_1, window_bounds = array<i64: 1, 3, 64, 64>}, {transform_indices = @transform_2, window_bounds = array<i64: 1, 1, 64>}, {transform_indices = @transform_3, window_bounds = array<i64: 1, 1, 64>}, {transform_indices = @transform_4, window_bounds = array<i64: 1, 1, 32, 64>}]} {
    %cst = arith.constant 0.000000e+00 : f32
    %0 = vector.broadcast %cst : f32 to vector<32x64xf32>
    %cst_0 = arith.constant 0.000000e+00 : bf16
    %1 = vector.broadcast %cst_0 : bf16 to vector<1x64xbf16>
    %c0 = arith.constant 0 : index
    %c0_1 = arith.constant 0 : index
    %2 = vector.load %arg7[%c0, %c0_1] : memref<34x64xbf16, #tpu.memory_space<vmem>>, vector<1x64xbf16>
    tpu.vector_store %arg7[%c0, %c0_1], %1 {strides = array<i32>} : memref<34x64xbf16, #tpu.memory_space<vmem>>, vector<1x64xbf16>,
    %c33 = arith.constant 33 : index
    %c0_2 = arith.constant 0 : index
    %3 = vector.load %arg7[%c33, %c0_2] : memref<34x64xbf16, #tpu.memory_space<vmem>>, vector<1x64xbf16>
    tpu.vector_store %arg7[%c33, %c0_2], %1 {strides = array<i32>} : memref<34x64xbf16, #tpu.memory_space<vmem>>, vector<1x64xbf16>,
    %c0_3 = arith.constant 0 : index
    %c0_4 = arith.constant 0 : index
    %c0_5 = arith.constant 0 : index
    %c0_6 = arith.constant 0 : index
    %4 = vector.load %arg2[%c0_3, %c0_4, %c0_5, %c0_6] : memref<1x1x32x64xbf16, #tpu.memory_space<vmem>>, vector<1x1x32x64xbf16>
    %5 = vector.shape_cast %4 : vector<1x1x32x64xbf16> to vector<32x64xbf16>
    %c1 = arith.constant 1 : index
    %c0_7 = arith.constant 0 : index
    %6 = vector.load %arg7[%c1, %c0_7] : memref<34x64xbf16, #tpu.memory_space<vmem>>, vector<32x64xbf16>
    tpu.vector_store %arg7[%c1, %c0_7], %5 {strides = array<i32>} : memref<34x64xbf16, #tpu.memory_space<vmem>>, vector<32x64xbf16>,
    %c0_8 = arith.constant 0 : index
    %c0_9 = arith.constant 0 : index
    %7 = vector.load %arg7[%c0_8, %c0_9] : memref<34x64xbf16, #tpu.memory_space<vmem>>, vector<32x64xbf16>
    %c0_10 = arith.constant 0 : index
    %c0_11 = arith.constant 0 : index
    %c0_12 = arith.constant 0 : index
    %c0_13 = arith.constant 0 : index
    %8 = vector.load %arg3[%c0_10, %c0_11, %c0_12, %c0_13] : memref<1x3x64x64xbf16, #tpu.memory_space<vmem>>, vector<1x1x64x64xbf16>
    %9 = vector.shape_cast %8 : vector<1x1x64x64xbf16> to vector<64x64xbf16>
    %cst_14 = arith.constant dense<0.000000e+00> : vector<32x64xf32>
    %10 = tpu.matmul %7, %9, %cst_14 {dimension_numbers = #tpu.dot_dimension_numbers<[1], [0], [0], [1], [0, 0, 1, 1], [], []>} : vector<32x64xbf16>, vector<64x64xbf16>, vector<32x64xf32> -> vector<32x64xf32>
    %11 = arith.addf %0, %10 : vector<32x64xf32>
    %c1_15 = arith.constant 1 : index
    %c0_16 = arith.constant 0 : index
    %12 = vector.load %arg7[%c1_15, %c0_16] : memref<34x64xbf16, #tpu.memory_space<vmem>>, vector<32x64xbf16>
    %c0_17 = arith.constant 0 : index
    %c1_18 = arith.constant 1 : index
    %c0_19 = arith.constant 0 : index
    %c0_20 = arith.constant 0 : index
    %13 = vector.load %arg3[%c0_17, %c1_18, %c0_19, %c0_20] : memref<1x3x64x64xbf16, #tpu.memory_space<vmem>>, vector<1x1x64x64xbf16>
    %14 = vector.shape_cast %13 : vector<1x1x64x64xbf16> to vector<64x64xbf16>
    %cst_21 = arith.constant dense<0.000000e+00> : vector<32x64xf32>
    %15 = tpu.matmul %12, %14, %cst_21 {dimension_numbers = #tpu.dot_dimension_numbers<[1], [0], [0], [1], [0, 0, 1, 1], [], []>} : vector<32x64xbf16>, vector<64x64xbf16>, vector<32x64xf32> -> vector<32x64xf32>
    %16 = arith.addf %11, %15 : vector<32x64xf32>
    %c2 = arith.constant 2 : index
    %c0_22 = arith.constant 0 : index
    %17 = vector.load %arg7[%c2, %c0_22] : memref<34x64xbf16, #tpu.memory_space<vmem>>, vector<32x64xbf16>
    %c0_23 = arith.constant 0 : index
    %c2_24 = arith.constant 2 : index
    %c0_25 = arith.constant 0 : index
    %c0_26 = arith.constant 0 : index
    %18 = vector.load %arg3[%c0_23, %c2_24, %c0_25, %c0_26] : memref<1x3x64x64xbf16, #tpu.memory_space<vmem>>, vector<1x1x64x64xbf16>
    %19 = vector.shape_cast %18 : vector<1x1x64x64xbf16> to vector<64x64xbf16>
    %cst_27 = arith.constant dense<0.000000e+00> : vector<32x64xf32>
    %20 = tpu.matmul %17, %19, %cst_27 {dimension_numbers = #tpu.dot_dimension_numbers<[1], [0], [0], [1], [0, 0, 1, 1], [], []>} : vector<32x64xbf16>, vector<64x64xbf16>, vector<32x64xf32> -> vector<32x64xf32>
    %21 = arith.addf %16, %20 : vector<32x64xf32>
    %c0_28 = arith.constant 0 : index
    %c0_29 = arith.constant 0 : index
    %c0_30 = arith.constant 0 : index
    %22 = vector.load %arg4[%c0_28, %c0_29, %c0_30] : memref<1x1x64xf32, #tpu.memory_space<vmem>>, vector<1x1x64xf32>
    %23 = vector.shape_cast %22 : vector<1x1x64xf32> to vector<1x64xf32>
    %24 = vector.broadcast %23 : vector<1x64xf32> to vector<32x64xf32>
    %25 = arith.mulf %21, %24 : vector<32x64xf32>
    %c0_31 = arith.constant 0 : index
    %c0_32 = arith.constant 0 : index
    %c0_33 = arith.constant 0 : index
    %26 = vector.load %arg5[%c0_31, %c0_32, %c0_33] : memref<1x1x64xf32, #tpu.memory_space<vmem>>, vector<1x1x64xf32>
    %27 = vector.shape_cast %26 : vector<1x1x64xf32> to vector<1x64xf32>
    %28 = vector.broadcast %27 : vector<1x64xf32> to vector<32x64xf32>
    %29 = arith.addf %25, %28 : vector<32x64xf32>
    %cst_34 = arith.constant 0.000000e+00 : f32
    %30 = vector.broadcast %cst_34 : f32 to vector<32x64xf32>
    %31 = arith.maximumf %29, %30 : vector<32x64xf32>
    %32 = arith.truncf %31 : vector<32x64xf32> to vector<32x64xbf16>
    %c0_35 = arith.constant 0 : index
    %c0_36 = arith.constant 0 : index
    %c0_37 = arith.constant 0 : index
    %c0_38 = arith.constant 0 : index
    %33 = vector.load %arg6[%c0_35, %c0_36, %c0_37, %c0_38] : memref<1x1x32x64xbf16, #tpu.memory_space<vmem>>, vector<1x1x32x64xbf16>
    %34 = vector.shape_cast %33 : vector<1x1x32x64xbf16> to vector<32x64xbf16>
    %35 = vector.shape_cast %32 : vector<32x64xbf16> to vector<1x1x32x64xbf16>
    tpu.vector_store %arg6[%c0_35, %c0_36, %c0_37, %c0_38], %35 {strides = array<i32>} : memref<1x1x32x64xbf16, #tpu.memory_space<vmem>>, vector<1x1x32x64xbf16>,
    return
  }
  func.func @transform_0(%arg0: i32, %arg1: i32) -> (i32, i32, i32, i32) {
    %c0_i32 = arith.constant 0 : i32
    %c0_i32_0 = arith.constant 0 : i32
    %c0_i32_1 = arith.constant 0 : i32
    %c0_i32_2 = arith.constant 0 : i32
    return %c0_i32, %arg1, %c0_i32_0, %c0_i32_1 : i32, i32, i32, i32
  }
  func.func @transform_1(%arg0: i32, %arg1: i32) -> (i32, i32, i32, i32) {
    %c0_i32 = arith.constant 0 : i32
    %c0_i32_0 = arith.constant 0 : i32
    %c0_i32_1 = arith.constant 0 : i32
    %c0_i32_2 = arith.constant 0 : i32
    return %arg0, %c0_i32, %c0_i32_0, %c0_i32_1 : i32, i32, i32, i32
  }
  func.func @transform_2(%arg0: i32, %arg1: i32) -> (i32, i32, i32) {
    %c0_i32 = arith.constant 0 : i32
    %c0_i32_0 = arith.constant 0 : i32
    %c0_i32_1 = arith.constant 0 : i32
    return %arg0, %c0_i32, %c0_i32_0 : i32, i32, i32
  }
  func.func @transform_3(%arg0: i32, %arg1: i32) -> (i32, i32, i32) {
    %c0_i32 = arith.constant 0 : i32
    %c0_i32_0 = arith.constant 0 : i32
    %c0_i32_1 = arith.constant 0 : i32
    return %arg0, %c0_i32, %c0_i32_0 : i32, i32, i32
  }
  func.func @transform_4(%arg0: i32, %arg1: i32) -> (i32, i32, i32, i32) {
    %c0_i32 = arith.constant 0 : i32
    %c0_i32_0 = arith.constant 0 : i32
    %c0_i32_1 = arith.constant 0 : i32
    return %arg0, %arg1, %c0_i32, %c0_i32_0 : i32, i32, i32, i32
  }
}

</mosaic_0001>

<llo_original>
// kernel: tpu_custom_call.1
$region0: #{tpu_custom_call.1}
  #allocation0 [shape = 'u32[]', space=smem, size = 0x4, offset = 0x4, fixed_abs, tag = 'smem constant byte address 0x4 - core index']
  #allocation1 [shape = 'u32[144,128]{1,0:T(1,128)}', space=vmem, size = 0x12000, scoped, tag = 'internal scratch']
  #allocation2 [shape = 'bf16[34,64]{1,0:T(8,128)(2,1)}', space=vmem, size = 0x2800, scoped, tag = 'scratch operand']
  %s0 = inlined_call_operand.hbm [shape: bf16[1,2,32,64], index: 0, kind: input, shape index: {}]
  %s1 = inlined_call_operand.hbm [shape: bf16[1,3,64,64], index: 1, kind: input, shape index: {}]
  %s2 = inlined_call_operand.vmem [shape: f32[1,1,64], index: 2, kind: input, shape index: {}]
  %s3 = inlined_call_operand.vmem [shape: f32[1,1,64], index: 3, kind: input, shape index: {}]
  %s4 = inlined_call_operand.hbm [shape: bf16[1,2,32,64], index: 4, kind: output, shape index: {}]
  %s5 = sld [smem:[#allocation0]]
  $region57: #{tpu_custom_call.1} parent=0
    _
  %s7 = ssub.s32 1, %s5
  %s8 = scalar_select 0, %s7, %s5
  $region1: #{tpu_custom_call.1} parent=0
    #allocation3 [shape = 'u8[16384]{0}', space=vmem, size = 0x4000, scoped, tag = 'input window, operand 0']
    #allocation4 [shape = 's32[2]{0}', space=sflag, size = 0x8, scoped, tag = 'scoped memory for tpu_custom_call.1']
    #allocation5 [shape = 's32[2]{0}', space=sflag, size = 0x8, scoped, tag = 'scoped memory for tpu_custom_call.1']
    #allocation6 [shape = 'u8[49152]{0}', space=vmem, size = 0xc000, scoped, tag = 'input window, operand 1, single buffered']
    #allocation7 [shape = 's32[1]{0}', space=sflag, size = 0x4, scoped, tag = 'scoped memory for tpu_custom_call.1']
    #allocation8 [shape = 'u8[16384]{0}', space=vmem, size = 0x4000, scoped, tag = 'output window, operand 0']
    %9 = vsyncpa [#allocation4], 0
    %s10 = scalar_lea.sflag [#allocation4], 1
    %11 = vsyncpa %s10, 0
    %12 = vsyncpa [#allocation7], 0
    %13 = vsyncpa [#allocation5], 0
    %s14 = scalar_lea.sflag [#allocation5], 1
    %15 = vsyncpa %s14, 0
    loop: start=0, step=1, limit=4
    $region2: #{tpu_custom_call.1} parent=1 // loop_pre_header
      _
    $region3: #{tpu_custom_call.1} parent=1 // loop_header
      %s17 = sphi 0, %s21
      %p18 = scmp.ge.s32.totalorder %s17, 4
      %s24 = sphi 0, %s36
      %s25 = sphi 0, %s32
      %s26 = sphi 0, %s24
      %s27 = sphi 0, %s25
      %s28 = sphi 0, %s26
      %s29 = sphi 0, %s27
      %s39 = sphi 0, %s41
      %s42 = sphi 0, %s39
      %s43 = sphi 0, %s42
      %s59 = sphi 0, %s43
      %s65 = sphi 0, %s67
      %s68 = sphi 0, %s65
      %s69 = sphi 0, %s68
      %s85 = sphi 0, %s69
      %s91 = sphi 0, %s93
      %s94 = sphi 0, %s91
      %s95 = sphi 0, %s94
      %s111 = sphi 0, %s95
      %s117 = sphi 0, %s119
      %s120 = sphi 0, %s117
      %s121 = sphi 0, %s120
      %s137 = sphi 0, %s121
      %s145 = sphi 0, %s147
      %s148 = sphi 0, %s145
      %s149 = sphi 0, %s148
      %s165 = sphi 0, %s149
    $region4: #{tpu_custom_call.1} parent=1 // loop_header_branch
      %20 = sbr.rel (%p18) target = $region8
    $region5: #{tpu_custom_call.1} parent=1 // loop_body
      %s22 = ssub.s32 %s17, 1
      %s23 = ssub.s32 %s17, 2
      %s30 = sadd.s32 1, %s25
      %p31 = scmp.ge.s32.totalorder %s30, 2
      %s32 = scalar_select %p31, 0, %s30
      %s33 = sadd.s32 1, %s24
      %s34 = scalar_select %p31, %s33, %s24
      %p35 = scmp.ge.s32.totalorder %s34, 1
      %s36 = scalar_select %p35, 0, %s34
      %s37 = ssub.s32 %s25, %s32
      %p38 = scmp.eq.s32.totalorder %s37, 0
      %s40 = sadd.s32 %s39, 1
      %s41 = scalar_select %p38, %s39, %s40
      %p44 = pneg %p38
      %p45 = scmp.eq.s32.totalorder %s17, 1
      %p46 = por %p44, %p45
      %p47 = scmp.ne.s32.totalorder %s39, %s42
      %p48 = scmp.eq.s32.totalorder %s17, 0
      %p49 = por %p47, %p48
      %p50 = scmp.ne.s32.totalorder %s39, %s42
      %p51 = scmp.eq.s32.totalorder %s22, 1
      %p52 = por %p50, %p51
      %p53 = scmp.ne.s32.totalorder %s42, %s43
      %p54 = scmp.eq.s32.totalorder %s22, 0
      %p55 = por %p53, %p54
      %p56 = scmp.ne.s32.totalorder %s42, %s43
      %p57 = scmp.eq.s32.totalorder %s23, 1
      %p58 = por %p56, %p57
      %p60 = scmp.ne.s32.totalorder %s43, %s59
      %p61 = scmp.eq.s32.totalorder %s23, 0
      %p62 = por %p60, %p61
      %s63 = ssub.s32 %s24, %s36
      %p64 = scmp.eq.s32.totalorder %s63, 0
      %s66 = sadd.s32 %s65, 1
      %s67 = scalar_select %p64, %s65, %s66
      %p70 = pneg %p64
      %p71 = scmp.eq.s32.totalorder %s17, 1
      %p72 = por %p70, %p71
      %p73 = scmp.ne.s32.totalorder %s65, %s68
      %p74 = scmp.eq.s32.totalorder %s17, 0
      %p75 = por %p73, %p74
      %p76 = scmp.ne.s32.totalorder %s65, %s68
      %p77 = scmp.eq.s32.totalorder %s22, 1
      %p78 = por %p76, %p77
      %p79 = scmp.ne.s32.totalorder %s68, %s69
      %p80 = scmp.eq.s32.totalorder %s22, 0
      %p81 = por %p79, %p80
      %p82 = scmp.ne.s32.totalorder %s68, %s69
      %p83 = scmp.eq.s32.totalorder %s23, 1
      %p84 = por %p82, %p83
      %p86 = scmp.ne.s32.totalorder %s69, %s85
      %p87 = scmp.eq.s32.totalorder %s23, 0
      %p88 = por %p86, %p87
      %s89 = ssub.s32 %s24, %s36
      %p90 = scmp.eq.s32.totalorder %s89, 0
      %s92 = sadd.s32 %s91, 1
      %s93 = scalar_select %p90, %s91, %s92
      %p96 = pneg %p90
      %p97 = scmp.eq.s32.totalorder %s17, 1
      %p98 = por %p96, %p97
      %p99 = scmp.ne.s32.totalorder %s91, %s94
      %p100 = scmp.eq.s32.totalorder %s17, 0
      %p101 = por %p99, %p100
      %p102 = scmp.ne.s32.totalorder %s91, %s94
      %p103 = scmp.eq.s32.totalorder %s22, 1
      %p104 = por %p102, %p103
      %p105 = scmp.ne.s32.totalorder %s94, %s95
      %p106 = scmp.eq.s32.totalorder %s22, 0
      %p107 = por %p105, %p106
      %p108 = scmp.ne.s32.totalorder %s94, %s95
      %p109 = scmp.eq.s32.totalorder %s23, 1
      %p110 = por %p108, %p109
      %p112 = scmp.ne.s32.totalorder %s95, %s111
      %p113 = scmp.eq.s32.totalorder %s23, 0
      %p114 = por %p112, %p113
      %s115 = ssub.s32 %s24, %s36
      %p116 = scmp.eq.s32.totalorder %s115, 0
      %s118 = sadd.s32 %s117, 1
      %s119 = scalar_select %p116, %s117, %s118
      %p122 = pneg %p116
      %p123 = scmp.eq.s32.totalorder %s17, 1
      %p124 = por %p122, %p123
      %p125 = scmp.ne.s32.totalorder %s117, %s120
      %p126 = scmp.eq.s32.totalorder %s17, 0
      %p127 = por %p125, %p126
      %p128 = scmp.ne.s32.totalorder %s117, %s120
      %p129 = scmp.eq.s32.totalorder %s22, 1
      %p130 = por %p128, %p129
      %p131 = scmp.ne.s32.totalorder %s120, %s121
      %p132 = scmp.eq.s32.totalorder %s22, 0
      %p133 = por %p131, %p132
      %p134 = scmp.ne.s32.totalorder %s120, %s121
      %p135 = scmp.eq.s32.totalorder %s23, 1
      %p136 = por %p134, %p135
      %p138 = scmp.ne.s32.totalorder %s121, %s137
      %p139 = scmp.eq.s32.totalorder %s23, 0
      %p140 = por %p138, %p139
      %s141 = ssub.s32 %s24, %s36
      %s142 = ssub.s32 %s25, %s32
      %s143 = sor.u32 %s141, %s142
      %p144 = scmp.eq.s32.totalorder %s143, 0
      %s146 = sadd.s32 %s145, 1
      %s147 = scalar_select %p144, %s145, %s146
      %p150 = pneg %p144
      %p151 = scmp.eq.s32.totalorder %s17, 1
      %p152 = por %p150, %p151
      %p153 = scmp.ne.s32.totalorder %s145, %s148
      %p154 = scmp.eq.s32.totalorder %s17, 0
      %p155 = por %p153, %p154
      %p156 = scmp.ne.s32.totalorder %s145, %s148
      %p157 = scmp.eq.s32.totalorder %s22, 1
      %p158 = por %p156, %p157
      %p159 = scmp.ne.s32.totalorder %s148, %s149
      %p160 = scmp.eq.s32.totalorder %s22, 0
      %p161 = por %p159, %p160
      %p162 = scmp.ne.s32.totalorder %s148, %s149
      %p163 = scmp.eq.s32.totalorder %s23, 1
      %p164 = por %p162, %p163
      %p166 = scmp.ne.s32.totalorder %s149, %s165
      %p167 = scmp.eq.s32.totalorder %s23, 0
      %p168 = por %p166, %p167
      %p169 = scmp.le.s32.totalorder 1, %s17
      %p170 = scmp.lt.s32.totalorder %s17, 3
      %p171 = pnand %p169, %p170
      %p172 = pneg %p171
      // Predicated region
      $region9: #{tpu_custom_call.1} parent=5 // pred_check
        _
      $region10: #{tpu_custom_call.1} parent=5 // pred_check_branch
        %174 = sbr.rel (%p171) target = $region12
      $region11: #{tpu_custom_call.1} parent=5 // pred_region
        %s175 = ssub.s32 %s17, 1
        // Predicated region
        $region13: #{tpu_custom_call.1} parent=11 // pred_check
          %p176 = pneg %p81
        $region14: #{tpu_custom_call.1} parent=11 // pred_check_branch
          %178 = sbr.rel (%p176) target = $region16
        $region15: #{tpu_custom_call.1} parent=11 // pred_region
          %s180 = ssub.s32 1536, 1536
          %181 = vsyncadd [#allocation7], %s180
          %s182 = smul.addr %s26, 24
          %s183 = smul.addr %s182, 64
          %s184 = scalar_lea.hbm %s1, %s183
          %s185 = sshll.u32 [#allocation6], 4
          %s186 = int_to_ptr.vmem [resolvable:$true] %s185
          %191 = dma.hbm_to_vmem [thread:$0]  %s184, 1536, %s186, [#allocation7], 64, 64, 4
        $region16: #{tpu_custom_call.1} parent=11 // pred_fallthru
          _
        // Predicated region
        $region17: #{tpu_custom_call.1} parent=11 // pred_check
          %p192 = pneg %p107
        $region18: #{tpu_custom_call.1} parent=11 // pred_check_branch
          %194 = sbr.rel (%p192) target = $region20
        $region19: #{tpu_custom_call.1} parent=11 // pred_region
          %p195 = scmp.lt.s32.totalorder %s26, 0
          %s196 = scalar_select %p195, %s26, 0
          %s197 = scalar_lea.vmem %s2, %s196
        $region20: #{tpu_custom_call.1} parent=11 // pred_fallthru
          _
        // Predicated region
        $region21: #{tpu_custom_call.1} parent=11 // pred_check
          %p198 = pneg %p133
        $region22: #{tpu_custom_call.1} parent=11 // pred_check_branch
          %200 = sbr.rel (%p198) target = $region24
        $region23: #{tpu_custom_call.1} parent=11 // pred_region
          %p201 = scmp.lt.s32.totalorder %s26, 0
          %s202 = scalar_select %p201, %s26, 0
          %s203 = scalar_lea.vmem %s3, %s202
        $region24: #{tpu_custom_call.1} parent=11 // pred_fallthru
          _
      $region12: #{tpu_custom_call.1} parent=5 // pred_fallthru
        _
      %p204 = scmp.lt.s32.totalorder %s17, 2
      // Predicated region
      $region25: #{tpu_custom_call.1} parent=5 // pred_check
        %p205 = pneg %p204
      $region26: #{tpu_custom_call.1} parent=5 // pred_check_branch
        %207 = sbr.rel (%p205) target = $region28
      $region27: #{tpu_custom_call.1} parent=5 // pred_region
        // Predicated region
        $region29: #{tpu_custom_call.1} parent=27 // pred_check
          %p208 = pneg %p49
        $region30: #{tpu_custom_call.1} parent=27 // pred_check_branch
          %210 = sbr.rel (%p208) target = $region32
        $region31: #{tpu_custom_call.1} parent=27 // pred_region
          %s211 = sand.u32 %s39, 1
          %s212 = scalar_lea.sflag [#allocation4], %s211
          %s213 = sand.u32 %s39, 1
          %s214 = smul.addr %s213, 16
          %s215 = scalar_lea.vmem [#allocation3], %s214
          %s217 = ssub.s32 256, 256
          %218 = vsyncadd %s212, %s217
          %s219 = smul.addr %s25, 4
          %s220 = smul.addr %s219, 64
          %s221 = scalar_lea.hbm %s0, %s220
          %s222 = sshll.u32 %s215, 4
          %s223 = int_to_ptr.vmem [resolvable:$true] %s222
          %228 = dma.hbm_to_vmem [thread:$0]  %s221, 256, %s223, %s212, 64, 64, 4
        $region32: #{tpu_custom_call.1} parent=27 // pred_fallthru
          _
      $region28: #{tpu_custom_call.1} parent=5 // pred_fallthru
        _
      %p229 = scmp.le.s32.totalorder 1, %s17
      %p230 = scmp.lt.s32.totalorder %s17, 3
      %p231 = pnand %p229, %p230
      %p232 = pneg %p231
      // Predicated region
      $region33: #{tpu_custom_call.1} parent=5 // pred_check
        _
      $region34: #{tpu_custom_call.1} parent=5 // pred_check_branch
        %234 = sbr.rel (%p231) target = $region36
      $region35: #{tpu_custom_call.1} parent=5 // pred_region
        %s235 = ssub.s32 %s17, 1
        %s236 = sand.u32 %s42, 1
        %s237 = scalar_lea.sflag [#allocation4], %s236
        %s238 = sand.u32 %s42, 1
        %s239 = smul.addr %s238, 16
        %s240 = scalar_lea.vmem [#allocation3], %s239
        // Predicated region
        $region37: #{tpu_custom_call.1} parent=35 // pred_check
          %p241 = pneg %p55
        $region38: #{tpu_custom_call.1} parent=35 // pred_check_branch
          %243 = sbr.rel (%p241) target = $region40
        $region39: #{tpu_custom_call.1} parent=35 // pred_region
          %244 = dma.done %s237, 256
        $region40: #{tpu_custom_call.1} parent=35 // pred_fallthru
          _
        // Predicated region
        $region41: #{tpu_custom_call.1} parent=35 // pred_check
          %p245 = pneg %p81
        $region42: #{tpu_custom_call.1} parent=35 // pred_check_branch
          %247 = sbr.rel (%p245) target = $region44
        $region43: #{tpu_custom_call.1} parent=35 // pred_region
          %248 = dma.done [#allocation7], 1536
        $region44: #{tpu_custom_call.1} parent=35 // pred_fallthru
          _
        %s249 = sand.u32 %s42, 1
        %s250 = scalar_lea.sflag [#allocation4], %s249
        %s251 = sand.u32 %s42, 1
        %s252 = smul.addr %s251, 16
        %s253 = scalar_lea.vmem [#allocation3], %s252
        %p254 = pneg %p55
        %p255 = pneg %p52
        %p256 = pneg %p81
        %p257 = pneg %p78
        %p258 = scmp.lt.s32.totalorder %s26, 0
        %s259 = scalar_select %p258, %s26, 0
        %s260 = scalar_lea.vmem %s2, %s259
        %p261 = pneg %p107
        %p262 = pneg %p104
        %p263 = scmp.lt.s32.totalorder %s26, 0
        %s264 = scalar_select %p263, %s26, 0
        %s265 = scalar_lea.vmem %s3, %s264
        %p266 = pneg %p133
        %p267 = pneg %p130
        %p268 = pneg %p161
        %p269 = pneg %p158
        %s270 = sand.u32 %s148, 1
        %s271 = scalar_lea.sflag [#allocation5], %s270
        %s272 = sand.u32 %s148, 1
        %s273 = smul.addr %s272, 16
        %s274 = scalar_lea.vmem [#allocation8], %s273
        %p275 = scmp.lt.s32.totalorder %s26, 0
        %s276 = scalar_select %p275, %s26, 0
        %s277 = scalar_lea.vmem %s2, %s276
        %p278 = scmp.lt.s32.totalorder %s26, 0
        %s279 = scalar_select %p278, %s26, 0
        %s280 = scalar_lea.vmem %s3, %s279
        %vm282 = vcmask 516096
        %vm283 = vsmask.f32 256
        %vm284 = vmand %vm282, %vm283
        %v285 = vld [vmem:[#allocation2] sm:$0x1]
        %v286 = vsel %vm284, 0, %v285
        %287 = vst [vmem:[#allocation2] sm:$0x1] %v286
        %vm288 = vsmask.f32 7938
        %vm289 = vmand %vm282, %vm288
        %v290 = vld [vmem:[#allocation2 + $0x10] sm:$0x1]
        %v291 = vsel %vm289, 0, %v290
        %292 = vst [vmem:[#allocation2 + $0x10] sm:$0x1] %v291
        %v293 = vld [vmem:[%s240] sm:$0xf]
        %v294 = vld [vmem:[%s240 + $0x4] sm:$0xf]
        %v295 = vld [vmem:[%s240 + $0x8] sm:$0xf]
        %v296 = vld [vmem:[%s240 + $0xc] sm:$0xf]
        %vm297 = vsmask.f32 4368
        %vm298 = vmor %vm283, %vm297
        %v300 = vshrl.u32 %v293, 16
        %v302 = vrot.slane %v300, 7
        %v303 = vshll.u32 %v293, 16
        %v305 = vor.u32 %v302, %v303
        %v306 = vrot.slane %v302, 4
        %v308 = vshrl.u32 %v294, 16
        %v310 = vrot.slane %v308, 7
        %v311 = vshll.u32 %v294, 16
        %v313 = vor.u32 %v310, %v311
        %v314 = vsel %vm298, %v306, %v313
        %v315 = vrot.slane %v310, 4
        %v317 = vshrl.u32 %v295, 16
        %v319 = vrot.slane %v317, 7
        %v320 = vshll.u32 %v295, 16
        %v322 = vor.u32 %v319, %v320
        %v323 = vsel %vm298, %v315, %v322
        %v324 = vrot.slane %v319, 4
        %v326 = vshrl.u32 %v296, 16
        %v328 = vrot.slane %v326, 7
        %v329 = vshll.u32 %v296, 16
        %v331 = vor.u32 %v328, %v329
        %v332 = vsel %vm298, %v324, %v331
        %v333 = vrot.slane %v328, 4
        %vm339 = vcmask 519168
        %vm340 = vmand %vm339, %vm288
        %v341 = vld [vmem:[#allocation2] sm:$0xf]
        %v342 = vsel %vm340, %v305, %v341
        %343 = vst [vmem:[#allocation2] sm:$0xf] %v342
        %vm344 = vcmask 519168
        %345 = vst.msk [vmem:[#allocation2 + $0x4] sm:$0xf] %vm344, %v314
        %346 = vst.msk [vmem:[#allocation2 + $0x8] sm:$0xf] %vm344, %v323
        %347 = vst.msk [vmem:[#allocation2 + $0xc] sm:$0xf] %vm344, %v332
        %v348 = vld [vmem:[#allocation2 + $0x10] sm:$0x1]
        %v349 = vsel %vm284, %v333, %v348
        %350 = vst [vmem:[#allocation2 + $0x10] sm:$0x1] %v349
        %v351 = vld [vmem:[#allocation2] sm:$0xf]
        %v352 = vld [vmem:[#allocation2 + $0x4] sm:$0xf]
        %v353 = vld [vmem:[#allocation2 + $0x8] sm:$0xf]
        %v354 = vld [vmem:[#allocation2 + $0xc] sm:$0xf]
        %v355 = vld [vmem:[#allocation6] sm:$0xf]
        %v356 = vld [vmem:[#allocation6 + $0x4] sm:$0xf]
        %v357 = vld [vmem:[#allocation6 + $0x8] sm:$0xf]
        %v358 = vld [vmem:[#allocation6 + $0xc] sm:$0xf]
        %v359 = vld [vmem:[#allocation6 + $0x10] sm:$0xf]
        %v360 = vld [vmem:[#allocation6 + $0x14] sm:$0xf]
        %v361 = vld [vmem:[#allocation6 + $0x18] sm:$0xf]
        %v362 = vld [vmem:[#allocation6 + $0x1c] sm:$0xf]
        %v363 = vld [vmem:[#allocation2 + $0x10] sm:$0x1]
        %s364 = scalar_lea.vmem [#allocation6], 32
        %v365 = vld [vmem:[%s364] sm:$0xf]
        %v366 = vld [vmem:[%s364 + $0x4] sm:$0xf]
        %v367 = vld [vmem:[%s364 + $0x8] sm:$0xf]
        %v368 = vld [vmem:[%s364 + $0xc] sm:$0xf]
        %v369 = vld [vmem:[%s364 + $0x10] sm:$0xf]
        %v370 = vld [vmem:[%s364 + $0x14] sm:$0xf]
        %v371 = vld [vmem:[%s364 + $0x18] sm:$0xf]
        %v372 = vld [vmem:[%s364 + $0x1c] sm:$0xf]
        %v378 = vunpack.c.l.b16 %v351
        %v379 = vunpack.c.l.b16 %v352
        %v380 = vunpack.c.l.b16 %v353
        %v381 = vunpack.c.l.b16 %v354
        %v382 = vunpack.c.l.b16 %v363
        %v383 = vpack.c.b16 %v379, %v378
        %v384 = vpack.c.b16 %v381, %v380
        %v385 = vpack.c.b16 %v382, %v382
        %vm386 = vsmask.f32 7424
        %v388 = vshrl.u32 %v383, 16
        %v390 = vshll.u32 %v383, 16
        %v392 = vrot.slane %v390, 1
        %v393 = vor.u32 %v388, %v392
        %v395 = vshll.u32 %v384, 16
        %v397 = vrot.slane %v395, 1
        %v398 = vsel %vm386, %v393, %v397
        %v399 = vshrl.u32 %v384, 16
        %v401 = vor.u32 %v399, %v397
        %v403 = vshll.u32 %v385, 16
        %v405 = vrot.slane %v403, 1
        %v406 = vsel %vm386, %v401, %v405
        %v415 = vunpack.c.l.b16 %v365
        %v416 = vunpack.c.l.b16 %v366
        %v417 = vunpack.c.l.b16 %v367
        %v418 = vunpack.c.l.b16 %v368
        %v419 = vunpack.c.l.b16 %v369
        %v420 = vunpack.c.l.b16 %v370
        %v421 = vunpack.c.l.b16 %v371
        %v422 = vunpack.c.l.b16 %v372
        %v423 = vpack.c.b16 %v416, %v415
        %v424 = vpack.c.b16 %v418, %v417
        %v425 = vpack.c.b16 %v420, %v419
        %v426 = vpack.c.b16 %v422, %v421
        %vm431 = vcmask 523264
        %v433 = vsel %vm431, %v398, 0
        %v436 = vsel %vm431, %v406, 0
        %438 = vmatprep.subr.bf16.mxu0 0
        %439 = vmatpush1.bf16.msra.mxu0 %v423
        %440 = vmatprep.subr.bf16.mxu0 0
        %441 = vmatpush1.bf16.msra.mxu0 %v424
        %442 = vmatprep.subr.bf16.mxu0 0
        %443 = vmatpush1.bf16.msra.mxu0 %v425
        %444 = vmatprep.subr.bf16.mxu0 0
        %445 = vmatpush1.bf16.msra.mxu0 %v426
        %446 = vmatprep.subr.bf16.mxu0 0
        %447 = vmatpush1.bf16.msra.mxu0 0
        %448 = vmatprep.subr.bf16.mxu0 0
        %449 = vmatpush1.bf16.msra.mxu0 0
        %450 = vmatprep.subr.bf16.mxu0 0
        %451 = vmatpush1.bf16.msra.mxu0 0
        %452 = vmatprep.subr.bf16.mxu0 0
        %453 = vmatpush1.bf16.msra.mxu0 0
        %454 = vmatprep.subr.bf16.mxu0 0
        %455 = vmatpush1.bf16.msra.mxu0 0
        %456 = vmatprep.subr.bf16.mxu0 0
        %457 = vmatpush1.bf16.msra.mxu0 0
        %458 = vmatprep.subr.bf16.mxu0 0
        %459 = vmatpush1.bf16.msra.mxu0 0
        %460 = vmatprep.subr.bf16.mxu0 0
        %461 = vmatpush1.bf16.msra.mxu0 0
        %462 = vmatprep.subr.bf16.mxu0 0
        %463 = vmatpush1.bf16.msra.mxu0 0
        %464 = vmatprep.subr.bf16.mxu0 0
        %465 = vmatpush1.bf16.msra.mxu0 0
        %466 = vmatprep.subr.bf16.mxu0 0
        %467 = vmatpush1.bf16.msra.mxu0 0
        %468 = vmatprep.subr.bf16.mxu0 0
        %469 = vmatpush1.bf16.msra.mxu0 0
        %470 = vmatprep.mubr.bf16.mxu0 0
        %471 = vmatmul.mubr.bf16.gmra.mrb[0].mxu0 %v433
        %v472 = vpop.f32.mrb[0].mxu0
        %v473 = vadd.f32 0.0, %v472
        %v474 = vpop.f32.mrb[0].mxu0
        %v475 = vpop.f32.mrb[0].mxu0
        %v476 = vadd.f32 0.0, %v475
        %v477 = vpop.f32.mrb[0].mxu0
        %478 = vmatprep.mubr.bf16.mxu0 0
        %479 = vmatmul.mubr.bf16.gmra.mrb[0].mxu0 %v436
        %v480 = vpop.f32.mrb[0].mxu0
        %v481 = vadd.f32 0.0, %v480
        %v482 = vpop.f32.mrb[0].mxu0
        %v483 = vpop.f32.mrb[0].mxu0
        %v484 = vadd.f32 0.0, %v483
        %v485 = vpop.f32.mrb[0].mxu0
        %486 = vdwg.mxu0
        %v495 = vunpack.c.l.b16 %v355
        %v496 = vunpack.c.l.b16 %v356
        %v497 = vunpack.c.l.b16 %v357
        %v498 = vunpack.c.l.b16 %v358
        %v499 = vunpack.c.l.b16 %v359
        %v500 = vunpack.c.l.b16 %v360
        %v501 = vunpack.c.l.b16 %v361
        %v502 = vunpack.c.l.b16 %v362
        %v503 = vpack.c.b16 %v496, %v495
        %v504 = vpack.c.b16 %v498, %v497
        %v505 = vpack.c.b16 %v500, %v499
        %v506 = vpack.c.b16 %v502, %v501
        %v511 = vsel %vm431, %v383, 0
        %v513 = vsel %vm431, %v384, 0
        %515 = vmatprep.subr.bf16.mxu0 0
        %516 = vmatpush1.bf16.msra.mxu0 %v503
        %517 = vmatprep.subr.bf16.mxu0 0
        %518 = vmatpush1.bf16.msra.mxu0 %v504
        %519 = vmatprep.subr.bf16.mxu0 0
        %520 = vmatpush1.bf16.msra.mxu0 %v505
        %521 = vmatprep.subr.bf16.mxu0 0
        %522 = vmatpush1.bf16.msra.mxu0 %v506
        %523 = vmatprep.subr.bf16.mxu0 0
        %524 = vmatpush1.bf16.msra.mxu0 0
        %525 = vmatprep.subr.bf16.mxu0 0
        %526 = vmatpush1.bf16.msra.mxu0 0
        %527 = vmatprep.subr.bf16.mxu0 0
        %528 = vmatpush1.bf16.msra.mxu0 0
        %529 = vmatprep.subr.bf16.mxu0 0
        %530 = vmatpush1.bf16.msra.mxu0 0
        %531 = vmatprep.subr.bf16.mxu0 0
        %532 = vmatpush1.bf16.msra.mxu0 0
        %533 = vmatprep.subr.bf16.mxu0 0
        %534 = vmatpush1.bf16.msra.mxu0 0
        %535 = vmatprep.subr.bf16.mxu0 0
        %536 = vmatpush1.bf16.msra.mxu0 0
        %537 = vmatprep.subr.bf16.mxu0 0
        %538 = vmatpush1.bf16.msra.mxu0 0
        %539 = vmatprep.subr.bf16.mxu0 0
        %540 = vmatpush1.bf16.msra.mxu0 0
        %541 = vmatprep.subr.bf16.mxu0 0
        %542 = vmatpush1.bf16.msra.mxu0 0
        %543 = vmatprep.subr.bf16.mxu0 0
        %544 = vmatpush1.bf16.msra.mxu0 0
        %545 = vmatprep.subr.bf16.mxu0 0
        %546 = vmatpush1.bf16.msra.mxu0 0
        %547 = vmatprep.mubr.bf16.mxu0 0
        %548 = vmatmul.mubr.bf16.gmra.mrb[0].mxu0 %v511
        %v549 = vpop.f32.mrb[0].mxu0
        %v550 = vadd.f32 %v473, %v549
        %v551 = vpop.f32.mrb[0].mxu0
        %v552 = vpop.f32.mrb[0].mxu0
        %v553 = vadd.f32 %v476, %v552
        %v554 = vpop.f32.mrb[0].mxu0
        %555 = vmatprep.mubr.bf16.mxu0 0
        %556 = vmatmul.mubr.bf16.gmra.mrb[0].mxu0 %v513
        %v557 = vpop.f32.mrb[0].mxu0
        %v558 = vadd.f32 %v481, %v557
        %v559 = vpop.f32.mrb[0].mxu0
        %v560 = vpop.f32.mrb[0].mxu0
        %v561 = vadd.f32 %v484, %v560
        %v562 = vpop.f32.mrb[0].mxu0
        %563 = vdwg.mxu0
        %v564 = vld [vmem:[#allocation2] sm:$0xe]
        %s565 = scalar_lea.vmem [#allocation6], 64
        %v566 = vld [vmem:[%s565] sm:$0xf]
        %v567 = vld [vmem:[%s565 + $0x4] sm:$0xf]
        %v568 = vld [vmem:[%s565 + $0x8] sm:$0xf]
        %v569 = vld [vmem:[%s565 + $0xc] sm:$0xf]
        %v570 = vld [vmem:[%s565 + $0x10] sm:$0xf]
        %v571 = vld [vmem:[%s565 + $0x14] sm:$0xf]
        %v572 = vld [vmem:[%s565 + $0x18] sm:$0xf]
        %v573 = vld [vmem:[%s565 + $0x1c] sm:$0xf]
        %v575 = vunpack.c.l.b16 %v564
        %v576 = vpack.c.b16 %v379, %v575
        %vm577 = vcmask 1046528
        %v578 = vrot.slane %v576, 1
        %v579 = vrot.slane %v384, 1
        %v580 = vsel %vm577, %v578, %v579
        %v581 = vrot.slane %v385, 1
        %v582 = vsel %vm577, %v579, %v581
        %v591 = vunpack.c.l.b16 %v566
        %v592 = vunpack.c.l.b16 %v567
        %v593 = vunpack.c.l.b16 %v568
        %v594 = vunpack.c.l.b16 %v569
        %v595 = vunpack.c.l.b16 %v570
        %v596 = vunpack.c.l.b16 %v571
        %v597 = vunpack.c.l.b16 %v572
        %v598 = vunpack.c.l.b16 %v573
        %v599 = vpack.c.b16 %v592, %v591
        %v600 = vpack.c.b16 %v594, %v593
        %v601 = vpack.c.b16 %v596, %v595
        %v602 = vpack.c.b16 %v598, %v597
        %v608 = vsel %vm431, %v580, 0
        %v611 = vsel %vm431, %v582, 0
        %613 = vmatprep.subr.bf16.mxu0 0
        %614 = vmatpush1.bf16.msra.mxu0 %v599
        %615 = vmatprep.subr.bf16.mxu0 0
        %616 = vmatpush1.bf16.msra.mxu0 %v600
        %617 = vmatprep.subr.bf16.mxu0 0
        %618 = vmatpush1.bf16.msra.mxu0 %v601
        %619 = vmatprep.subr.bf16.mxu0 0
        %620 = vmatpush1.bf16.msra.mxu0 %v602
        %621 = vmatprep.subr.bf16.mxu0 0
        %622 = vmatpush1.bf16.msra.mxu0 0
        %623 = vmatprep.subr.bf16.mxu0 0
        %624 = vmatpush1.bf16.msra.mxu0 0
        %625 = vmatprep.subr.bf16.mxu0 0
        %626 = vmatpush1.bf16.msra.mxu0 0
        %627 = vmatprep.subr.bf16.mxu0 0
        %628 = vmatpush1.bf16.msra.mxu0 0
        %629 = vmatprep.subr.bf16.mxu0 0
        %630 = vmatpush1.bf16.msra.mxu0 0
        %631 = vmatprep.subr.bf16.mxu0 0
        %632 = vmatpush1.bf16.msra.mxu0 0
        %633 = vmatprep.subr.bf16.mxu0 0
        %634 = vmatpush1.bf16.msra.mxu0 0
        %635 = vmatprep.subr.bf16.mxu0 0
        %636 = vmatpush1.bf16.msra.mxu0 0
        %637 = vmatprep.subr.bf16.mxu0 0
        %638 = vmatpush1.bf16.msra.mxu0 0
        %639 = vmatprep.subr.bf16.mxu0 0
        %640 = vmatpush1.bf16.msra.mxu0 0
        %641 = vmatprep.subr.bf16.mxu0 0
        %642 = vmatpush1.bf16.msra.mxu0 0
        %643 = vmatprep.subr.bf16.mxu0 0
        %644 = vmatpush1.bf16.msra.mxu0 0
        %645 = vmatprep.mubr.bf16.mxu0 0
        %646 = vmatmul.mubr.bf16.gmra.mrb[0].mxu0 %v608
        %v647 = vpop.f32.mrb[0].mxu0
        %v648 = vadd.f32 0.0, %v647
        %v649 = vpop.f32.mrb[0].mxu0
        %v650 = vpop.f32.mrb[0].mxu0
        %v651 = vadd.f32 0.0, %v650
        %v652 = vpop.f32.mrb[0].mxu0
        %653 = vmatprep.mubr.bf16.mxu0 0
        %654 = vmatmul.mubr.bf16.gmra.mrb[0].mxu0 %v611
        %v655 = vpop.f32.mrb[0].mxu0
        %v656 = vadd.f32 0.0, %v655
        %v657 = vpop.f32.mrb[0].mxu0
        %v658 = vpop.f32.mrb[0].mxu0
        %v659 = vadd.f32 0.0, %v658
        %v660 = vpop.f32.mrb[0].mxu0
        %661 = vdwg.mxu0
        %v662 = vadd.f32 %v550, %v648
        %v663 = vadd.f32 %v553, %v651
        %v664 = vadd.f32 %v558, %v656
        %v665 = vadd.f32 %v561, %v659
        %v666 = vld [vmem:[%s277] sm:$0x1]
        %v668 = vlaneseq
        %v669 = vshrl.u32 %v668, 7
        %v670 = vsub.s32 0, %v669
        %v671 = vrot.slane %v666, %v670
        %v673 = vmul.f32 %v662, %v671
        %v674 = vmul.f32 %v663, %v671
        %v675 = vmul.f32 %v664, %v671
        %v676 = vmul.f32 %v665, %v671
        %v677 = vld [vmem:[%s280] sm:$0x1]
        %v679 = vlaneseq
        %v680 = vshrl.u32 %v679, 7
        %v681 = vsub.s32 0, %v680
        %v682 = vrot.slane %v677, %v681
        %v684 = vadd.f32 %v673, %v682
        %v685 = vadd.f32 %v674, %v682
        %v686 = vadd.f32 %v675, %v682
        %v687 = vadd.f32 %v676, %v682
        %v688 = vmax.f32 %v684, 0.0
        %v689 = vmax.f32 %v685, 0.0
        %v690 = vmax.f32 %v686, 0.0
        %v691 = vmax.f32 %v687, 0.0
        %v692 = vpack.c.bf16 %v689, %v688
        %v693 = vpack.c.bf16 %v691, %v690
        %v696 = vunpack.c.l.b16 %v692
        %v697 = vunpack.c.h.b16 %v692
        %v698 = vunpack.c.l.b16 %v693
        %v699 = vunpack.c.h.b16 %v693
        %v700 = vpack.c.b16 %v696, %v696
        %v701 = vpack.c.b16 %v697, %v697
        %v702 = vpack.c.b16 %v698, %v698
        %v703 = vpack.c.b16 %v699, %v699
        %708 = vst.msk [vmem:[%s274] sm:$0xf] %vm344, %v700
        %709 = vst.msk [vmem:[%s274 + $0x4] sm:$0xf] %vm344, %v701
        %710 = vst.msk [vmem:[%s274 + $0x8] sm:$0xf] %vm344, %v702
        %711 = vst.msk [vmem:[%s274 + $0xc] sm:$0xf] %vm344, %v703
        %s712 = sand.u32 %s148, 1
        %s713 = scalar_lea.sflag [#allocation5], %s712
        %s714 = sand.u32 %s148, 1
        %s715 = smul.addr %s714, 16
        %s716 = scalar_lea.vmem [#allocation8], %s715
        // Predicated region
        $region45: #{tpu_custom_call.1} parent=35 // pred_check
          %p717 = pneg %p158
        $region46: #{tpu_custom_call.1} parent=35 // pred_check_branch
          %719 = sbr.rel (%p717) target = $region48
        $region47: #{tpu_custom_call.1} parent=35 // pred_region
          %s721 = ssub.s32 256, 256
          %722 = vsyncadd %s713, %s721
          %s723 = smul.addr %s27, 4
          %s724 = smul.addr %s26, 8
          %s725 = sadd.s32 %s723, %s724
          %s726 = smul.addr %s725, 64
          %s727 = scalar_lea.hbm %s4, %s726
          %s728 = sshll.u32 %s716, 4
          %s729 = int_to_ptr.vmem [resolvable:$true] %s728
          %734 = dma.vmem_to_hbm [thread:$0]  %s729, 256, %s727, %s713, 64, 64, 4
        $region48: #{tpu_custom_call.1} parent=35 // pred_fallthru
          _
      $region36: #{tpu_custom_call.1} parent=5 // pred_fallthru
        _
      %p735 = scmp.le.s32.totalorder 2, %s17
      // Predicated region
      $region49: #{tpu_custom_call.1} parent=5 // pred_check
        %p736 = pneg %p735
      $region50: #{tpu_custom_call.1} parent=5 // pred_check_branch
        %738 = sbr.rel (%p736) target = $region52
      $region51: #{tpu_custom_call.1} parent=5 // pred_region
        %s739 = ssub.s32 %s17, 2
        // Predicated region
        $region53: #{tpu_custom_call.1} parent=51 // pred_check
          %p740 = pneg %p164
        $region54: #{tpu_custom_call.1} parent=51 // pred_check_branch
          %742 = sbr.rel (%p740) target = $region56
        $region55: #{tpu_custom_call.1} parent=51 // pred_region
          %s743 = sand.u32 %s149, 1
          %s744 = scalar_lea.sflag [#allocation5], %s743
          %s745 = sand.u32 %s149, 1
          %s746 = smul.addr %s745, 16
          %s747 = scalar_lea.vmem [#allocation8], %s746
          %748 = dma.done %s744, 256
        $region56: #{tpu_custom_call.1} parent=51 // pred_fallthru
          _
      $region52: #{tpu_custom_call.1} parent=5 // pred_fallthru
        _
    $region6: #{tpu_custom_call.1} parent=1 // loop_footer
      %s21 = sadd.s32 1, %s17
    $region7: #{tpu_custom_call.1} parent=1 // loop_footer_branch
      %16 = sbr.rel target = $region3
    $region8: #{tpu_custom_call.1} parent=1 // loop_exit
      _
    %749 = vsyncpa [#allocation4], 1
    %s750 = scalar_lea.sflag [#allocation4], 1
    %751 = vsyncpa %s750, 1
    %752 = vsyncpa [#allocation7], 1
    %753 = vsyncpa [#allocation5], 1
    %s754 = scalar_lea.sflag [#allocation5], 1
    %755 = vsyncpa %s754, 1

</llo_original>
